<compile_context>
chip_gen: v6e
topology: v6e:2x2x1
jax: 0.10.0
libtpu: 0.0.40
codegen_flags: <defaults>
</compile_context>

<pallas_src>
import numpy as np
import jax
import jax.numpy as jnp
from jax.experimental import pallas as pl
from jax.experimental.pallas import tpu as pltpu


# ---------------------------------------------------------------------------
# Pallas kernel: pure copy (the gather is done by the input index_map).
# ---------------------------------------------------------------------------
def _gather_copy_kernel(src_idx_ref, src_ref, o_ref):
    # src_idx_ref lives in SMEM (scalar prefetch) and is only consumed by the
    # BlockSpec index_maps; the body is a straight VMEM copy of the selected
    # lane-dense block.
    del src_idx_ref
    o_ref[...] = src_ref[...]


def _pick_lane_width(p_padded):
    """Largest lane width (multiple of 128) that divides the padded slab size."""
    for lane in (4096, 2048, 1024, 512, 256, 128):
        if p_padded % lane == 0:
            return lane
    return 128  # unreachable: p_padded is a multiple of 128


def _pick_row_tile(rows, lane, itemsize, budget_bytes=3 * 1024 * 1024):
    """Largest divisor of `rows` whose block stays under the VMEM budget."""
    max_rows = max(1, budget_bytes // (lane * itemsize))
    for t in range(min(rows, max_rows), 0, -1):
        if rows % t == 0:
            return t
    return 1


def combine_features_pallas(camera_feature, lidar_feature, mode):
    """Pallas equivalent of BaseCameraLiDARIntermediate.combine_features.

    camera_feature: (N_cam, C, H, W)
    lidar_feature : (N_lid, C, H, W)
    mode          : (N,) int, 0 -> camera agent, 1 -> lidar agent (un-padded)
    returns       : (N, C, H, W)
    """
    mode = jnp.asarray(mode).astype(jnp.int32)
    N = int(mode.shape[0])
    n_cam = int(camera_feature.shape[0])
    C, H, W = camera_feature.shape[1:]
    assert tuple(lidar_feature.shape[1:]) == (C, H, W), "camera/lidar slab shape mismatch"
    dtype = jnp.result_type(camera_feature.dtype, lidar_feature.dtype)

    # Mirror the PyTorch ValueError for invalid modes when `mode` is concrete.
    try:
        m_np = np.asarray(mode)
        if m_np.size and not np.all((m_np == 0) | (m_np == 1)):
            bad = int(m_np[(m_np != 0) & (m_np != 1)][0])
            raise ValueError(f"Mode but be either 1 or 0 but received {bad}")
    except (jax.errors.TracerArrayConversionError, jax.errors.ConcretizationTypeError):
        pass  # traced mode: validation is skipped (same values assumed valid)

    if N == 0:
        return jnp.zeros((0, C, H, W), dtype=dtype)

    # Single concatenated source stack -> one input DMA per block.
    # Zero-size camera or lidar stacks are handled naturally by the concat
    # (no clamped dummy index, no OOB DMA).
    src = jnp.concatenate(
        [camera_feature.astype(dtype), lidar_feature.astype(dtype)], axis=0
    )
    n_src = int(src.shape[0])

    is_cam = mode == 0
    is_lid = jnp.logical_not(is_cam)
    cam_i = jnp.cumsum(is_cam.astype(jnp.int32)) - is_cam.astype(jnp.int32)
    lid_i = jnp.cumsum(is_lid.astype(jnp.int32)) - is_lid.astype(jnp.int32)
    src_idx = jnp.where(is_cam, cam_i, n_cam + lid_i)
    # Safety net against OOB DMA if an invalid (traced) mode slips through.
    src_idx = jnp.clip(src_idx, 0, n_src - 1).astype(jnp.int32)

    # Lane-dense 3D view: (n_src, rows, lane), lane a multiple of 128.
    P = C * H * W
    src2 = src.reshape(n_src, P)
    pad = (-P) % 128
    if pad:
        src2 = jnp.pad(src2, ((0, 0), (0, pad)))
    Pp = P + pad
    lane = _pick_lane_width(Pp)
    rows = Pp // lane
    itemsize = jnp.dtype(dtype).itemsize
    row_tile = _pick_row_tile(rows, lane, itemsize)
    src3 = src2.reshape(n_src, rows, lane)

    grid = (N, rows // row_tile)
    grid_spec = pltpu.PrefetchScalarGridSpec(
        num_scalar_prefetch=1,
        grid=grid,
        in_specs=[
            pl.BlockSpec(
                (1, row_tile, lane),
                lambda i, r, src_idx_ref: (src_idx_ref[i], r, 0),
            )
        ],
        out_specs=pl.BlockSpec(
            (1, row_tile, lane),
            lambda i, r, src_idx_ref: (i, r, 0),
        ),
    )

    out = pl.pallas_call(
        _gather_copy_kernel,
        out_shape=jax.ShapeDtypeStruct((N, rows, lane), dtype),
        grid_spec=grid_spec,
        compiler_params=pltpu.CompilerParams(
            dimension_semantics=("parallel", "parallel"),
            vmem_limit_bytes=32 * 1024 * 1024,
        ),
    )(src_idx, src3)

    out = out.reshape(N, Pp)
    if pad:
        out = out[:, :P]
    return out.reshape(N, C, H, W)


# ---------------------------------------------------------------------------
# JAX port of the module (forward is identity; helpers are glue + kernel).
# ---------------------------------------------------------------------------
class BaseCameraLiDARIntermediate:
    def __init__(self, config):
        # No learnable parameters in __init__ (encoders / fusion net are None).
        self.camera_encoder = None
        self.lidar_encoder = None
        self.fusion_net = None
        self.downsample_rate = config["spatial_transform"]["downsample_rate"]
        self.discrete_ratio = config["spatial_transform"]["voxel_size"][0]
        self.use_roi_mask = config["spatial_transform"]["use_roi_mask"]

    # record_len is treated as static (python ints) — ragged concat is glue.
    def unpad_mode_encoding(self, mode, record_len):
        B = mode.shape[0]
        out = [mode[i, : int(record_len[i])] for i in range(B)]
        return jnp.concatenate(out, axis=0).astype(jnp.int32)

    def unpad_features(self, x, record_len):
        B = x.shape[0]
        out = [x[i, : int(record_len[i]), ...] for i in range(B)]
        return jnp.concatenate(out, axis=0)

    def combine_features(self, camera_feature, lidar_feature, mode, record_len):
        if mode.ndim == 2:
            mode = self.unpad_mode_encoding(mode, record_len)
        return combine_features_pallas(camera_feature, lidar_feature, mode)

    # TODO(synk): extract_camera_input / extract_lidar_input do boolean-mask
    # selection over ragged voxel lists (data-dependent output shapes) — no
    # clean static-shape Pallas equivalent; left on the host/glue path.

    def forward(self, batch):
        # PyTorch forward is an identity pass-through of the batch dict.
        return batch


# ---------------------------------------------------------------------------
# Demo / self-check
# ---------------------------------------------------------------------------
if __name__ == "__main__":
    config = {
        "spatial_transform": {
            "downsample_rate": 4,
            "voxel_size": [0.4, 0.4, 4.0],
            "use_roi_mask": True,
        }
    }
    model = BaseCameraLiDARIntermediate(config)

    key = jax.random.PRNGKey(0)
    k_cam, k_lid, k_cam2 = jax.random.split(key, 3)

    # Small shapes: B=2 samples, max 3 agents each, record_len = [3, 2] -> 5 agents
    record_len = np.array([3, 2], dtype=np.int32)
    # padded per-sample mode encoding (0 = camera agent, 1 = lidar agent)
    mode_padded = jnp.array([[0, 1, 0], [0, 1, -1]], dtype=jnp.int32)

    C, H, W = 4, 16, 16
    mode_flat = model.unpad_mode_encoding(mode_padded, record_len)   # (5,)
    mode_np = np.asarray(mode_flat)
    n_cam = int((mode_np == 0).sum())   # 3
    n_lid = int((mode_np == 1).sum())   # 2

    camera_feature = jax.random.normal(k_cam, (n_cam, C, H, W), dtype=jnp.float32)
    lidar_feature = jax.random.normal(k_lid, (n_lid, C, H, W), dtype=jnp.float32)

    # forward() identity semantics
    batch = {"mode": mode_padded, "record_len": record_len}
    out_batch = model.forward(batch)
    assert out_batch is batch

    # Run the Pallas kernel (combine_features hot path)
    fused = model.combine_features(camera_feature, lidar_feature, mode_padded, record_len)
    fused = jax.block_until_ready(fused)

    # Reference (mirrors the PyTorch loop)
    cam_np = np.asarray(camera_feature)
    lid_np = np.asarray(lidar_feature)
    ref_list, cc, lc = [], 0, 0
    for m in mode_np:
        if m == 0:
            ref_list.append(cam_np[cc]); cc += 1
        else:
            ref_list.append(lid_np[lc]); lc += 1
    ref = np.stack(ref_list, axis=0)

    np.testing.assert_allclose(np.asarray(fused), ref, rtol=0, atol=0)
    assert fused.shape == (n_cam + n_lid, C, H, W)
    assert fused.dtype == jnp.float32

    # Edge case: all-camera scene (zero-size lidar stack) — previously needed
    # a clamped dummy index; the concat + single-index path handles it natively.
    cam_only = jax.random.normal(k_cam2, (2, C, H, W), dtype=jnp.float32)
    empty_lid = jnp.zeros((0, C, H, W), dtype=jnp.float32)
    fused2 = combine_features_pallas(cam_only, empty_lid, jnp.array([0, 0], jnp.int32))
    fused2 = jax.block_until_ready(fused2)
    np.testing.assert_allclose(np.asarray(fused2), np.asarray(cam_only), rtol=0, atol=0)

    print("KERNEL_OK")
</pallas_src>

<mosaic_0001>
module attributes {stable_mosaic.version = 11 : i64} {
  func.func @_gather_copy_kernel(%arg0: i32, %arg1: i32, %arg2: memref<5xi32, #tpu.memory_space<smem>>, %arg3: memref<1x1x1024xf32, #tpu.memory_space<vmem>>, %arg4: memref<1x1x1024xf32, #tpu.memory_space<vmem>>) attributes {dimension_semantics = [#tpu.dimension_semantics<parallel>, #tpu.dimension_semantics<parallel>], iteration_bounds = array<i64: 5, 1>, scalar_prefetch = 1 : i64, scratch_operands = 0 : i64, tpu.core_type = #tpu.core_type<tc>, window_params = [{transform_indices = @transform_0, window_bounds = array<i64: 1, 1, 1024>}, {transform_indices = @transform_1, window_bounds = array<i64: 1, 1, 1024>}]} {
    %c0 = arith.constant 0 : index
    %c0_0 = arith.constant 0 : index
    %c0_1 = arith.constant 0 : index
    %0 = vector.load %arg3[%c0, %c0_0, %c0_1] : memref<1x1x1024xf32, #tpu.memory_space<vmem>>, vector<1x1x1024xf32>
    %c0_2 = arith.constant 0 : index
    %c0_3 = arith.constant 0 : index
    %c0_4 = arith.constant 0 : index
    %1 = vector.load %arg4[%c0_2, %c0_3, %c0_4] : memref<1x1x1024xf32, #tpu.memory_space<vmem>>, vector<1x1x1024xf32>
    tpu.vector_store %arg4[%c0_2, %c0_3, %c0_4], %0 {strides = array<i32>} : memref<1x1x1024xf32, #tpu.memory_space<vmem>>, vector<1x1x1024xf32>,
    return
  }
  func.func @transform_0(%arg0: i32, %arg1: i32, %arg2: memref<5xi32, #tpu.memory_space<smem>>) -> (i32, i32, i32) {
    %0 = arith.index_cast %arg0 : i32 to index
    %1 = memref.load %arg2[%0] : memref<5xi32, #tpu.memory_space<smem>>
    %c0_i32 = arith.constant 0 : i32
    %c0_i32_0 = arith.constant 0 : i32
    return %1, %arg1, %c0_i32 : i32, i32, i32
  }
  func.func @transform_1(%arg0: i32, %arg1: i32, %arg2: memref<5xi32, #tpu.memory_space<smem>>) -> (i32, i32, i32) {
    %c0_i32 = arith.constant 0 : i32
    %c0_i32_0 = arith.constant 0 : i32
    return %arg0, %arg1, %c0_i32 : i32, i32, i32
  }
}

</mosaic_0001>

<llo_original>
// kernel: tpu_custom_call.1
$region0: #{tpu_custom_call.1}
  #allocation0 [shape = 'u32[]', space=smem, size = 0x4, offset = 0x4, fixed_abs, tag = 'smem constant byte address 0x4 - core index']
  #allocation1 [shape = 'u32[144,128]{1,0:T(1,128)}', space=vmem, size = 0x12000, scoped, tag = 'internal scratch']
  #allocation2 [shape = 's32[1]{0}', space=sflag, size = 0x4, scoped, tag = 'scoped memory for tpu_custom_call.1']
  #allocation3 [shape = 'u8[512]{0}', space=smem, size = 0x200, scoped, tag = 'prefetched SMEM operand 0']
  %s0 = inlined_call_operand.hbm [shape: s32[5], index: 0, kind: input, shape index: {}]
  %s1 = inlined_call_operand.hbm [shape: f32[5,1,1024], index: 1, kind: input, shape index: {}]
  %s2 = inlined_call_operand.hbm [shape: f32[5,1,1024], index: 2, kind: output, shape index: {}]
  %s3 = sld [smem:[#allocation0]]
  $region41: #{tpu_custom_call.1} parent=0
    _
  %s5 = ssub.s32 1, %s3
  %s6 = scalar_select 0, %s5, %s3
  %8 = dma.hbm_to_smem %s0, 16, [#allocation3], [#allocation2]
  %9 = dma.done [#allocation2], 16
  %10 = sfence
  $region1: #{tpu_custom_call.1} parent=0
    #allocation4 [shape = 'u8[8192]{0}', space=vmem, size = 0x2000, scoped, tag = 'input window, operand 1']
    #allocation5 [shape = 's32[2]{0}', space=sflag, size = 0x8, scoped, tag = 'scoped memory for tpu_custom_call.1']
    #allocation6 [shape = 's32[2]{0}', space=sflag, size = 0x8, scoped, tag = 'scoped memory for tpu_custom_call.1']
    #allocation7 [shape = 'u8[8192]{0}', space=vmem, size = 0x2000, scoped, tag = 'output window, operand 0']
    %11 = vsyncpa [#allocation5], 0
    %s12 = scalar_lea.sflag [#allocation5], 1
    %13 = vsyncpa %s12, 0
    %14 = vsyncpa [#allocation6], 0
    %s15 = scalar_lea.sflag [#allocation6], 1
    %16 = vsyncpa %s15, 0
    loop: start=0, step=1, limit=7
    $region2: #{tpu_custom_call.1} parent=1 // loop_pre_header
      _
    $region3: #{tpu_custom_call.1} parent=1 // loop_header
      %s18 = sphi 0, %s22
      %p19 = scmp.ge.s32.totalorder %s18, 7
      %s25 = sphi 0, %s37
      %s26 = sphi 0, %s33
      %s27 = sphi 0, %s25
      %s28 = sphi 0, %s26
      %s29 = sphi 0, %s27
      %s30 = sphi 0, %s28
      %s44 = sphi 0, %s46
      %s47 = sphi 0, %s44
      %s48 = sphi 0, %s47
      %s64 = sphi 0, %s48
      %s72 = sphi 0, %s74
      %s75 = sphi 0, %s72
      %s76 = sphi 0, %s75
      %s92 = sphi 0, %s76
    $region4: #{tpu_custom_call.1} parent=1 // loop_header_branch
      %21 = sbr.rel (%p19) target = $region8
    $region5: #{tpu_custom_call.1} parent=1 // loop_body
      %s23 = ssub.s32 %s18, 1
      %s24 = ssub.s32 %s18, 2
      %s31 = sadd.s32 1, %s26
      %p32 = scmp.ge.s32.totalorder %s31, 1
      %s33 = scalar_select %p32, 0, %s31
      %s34 = sadd.s32 1, %s25
      %s35 = scalar_select %p32, %s34, %s25
      %p36 = scmp.ge.s32.totalorder %s35, 5
      %s37 = scalar_select %p36, 0, %s35
      %s38 = sld [smem:[#allocation3 + %s25]]
      %s39 = sld [smem:[#allocation3 + %s37]]
      %s40 = ssub.s32 %s38, %s39
      %s41 = ssub.s32 %s26, %s33
      %s42 = sor.u32 %s40, %s41
      %p43 = scmp.eq.s32.totalorder %s42, 0
      %s45 = sadd.s32 %s44, 1
      %s46 = scalar_select %p43, %s44, %s45
      %p49 = pneg %p43
      %p50 = scmp.eq.s32.totalorder %s18, 4
      %p51 = por %p49, %p50
      %p52 = scmp.ne.s32.totalorder %s44, %s47
      %p53 = scmp.eq.s32.totalorder %s18, 0
      %p54 = por %p52, %p53
      %p55 = scmp.ne.s32.totalorder %s44, %s47
      %p56 = scmp.eq.s32.totalorder %s23, 4
      %p57 = por %p55, %p56
      %p58 = scmp.ne.s32.totalorder %s47, %s48
      %p59 = scmp.eq.s32.totalorder %s23, 0
      %p60 = por %p58, %p59
      %p61 = scmp.ne.s32.totalorder %s47, %s48
      %p62 = scmp.eq.s32.totalorder %s24, 4
      %p63 = por %p61, %p62
      %p65 = scmp.ne.s32.totalorder %s48, %s64
      %p66 = scmp.eq.s32.totalorder %s24, 0
      %p67 = por %p65, %p66
      %s68 = ssub.s32 %s25, %s37
      %s69 = ssub.s32 %s26, %s33
      %s70 = sor.u32 %s68, %s69
      %p71 = scmp.eq.s32.totalorder %s70, 0
      %s73 = sadd.s32 %s72, 1
      %s74 = scalar_select %p71, %s72, %s73
      %p77 = pneg %p71
      %p78 = scmp.eq.s32.totalorder %s18, 4
      %p79 = por %p77, %p78
      %p80 = scmp.ne.s32.totalorder %s72, %s75
      %p81 = scmp.eq.s32.totalorder %s18, 0
      %p82 = por %p80, %p81
      %p83 = scmp.ne.s32.totalorder %s72, %s75
      %p84 = scmp.eq.s32.totalorder %s23, 4
      %p85 = por %p83, %p84
      %p86 = scmp.ne.s32.totalorder %s75, %s76
      %p87 = scmp.eq.s32.totalorder %s23, 0
      %p88 = por %p86, %p87
      %p89 = scmp.ne.s32.totalorder %s75, %s76
      %p90 = scmp.eq.s32.totalorder %s24, 4
      %p91 = por %p89, %p90
      %p93 = scmp.ne.s32.totalorder %s76, %s92
      %p94 = scmp.eq.s32.totalorder %s24, 0
      %p95 = por %p93, %p94
      %p96 = scmp.le.s32.totalorder 1, %s18
      %p97 = scmp.lt.s32.totalorder %s18, 6
      %p98 = pnand %p96, %p97
      %p99 = pneg %p98
      // Predicated region
      $region9: #{tpu_custom_call.1} parent=5 // pred_check
        _
      $region10: #{tpu_custom_call.1} parent=5 // pred_check_branch
        %101 = sbr.rel (%p98) target = $region12
      $region11: #{tpu_custom_call.1} parent=5 // pred_region
        %s102 = ssub.s32 %s18, 1
      $region12: #{tpu_custom_call.1} parent=5 // pred_fallthru
        _
      %p103 = scmp.lt.s32.totalorder %s18, 5
      // Predicated region
      $region13: #{tpu_custom_call.1} parent=5 // pred_check
        %p104 = pneg %p103
      $region14: #{tpu_custom_call.1} parent=5 // pred_check_branch
        %106 = sbr.rel (%p104) target = $region16
      $region15: #{tpu_custom_call.1} parent=5 // pred_region
        // Predicated region
        $region17: #{tpu_custom_call.1} parent=15 // pred_check
          %p107 = pneg %p54
        $region18: #{tpu_custom_call.1} parent=15 // pred_check_branch
          %109 = sbr.rel (%p107) target = $region20
        $region19: #{tpu_custom_call.1} parent=15 // pred_region
          %s110 = sand.u32 %s44, 1
          %s111 = scalar_lea.sflag [#allocation5], %s110
          %s112 = sand.u32 %s44, 1
          %s113 = smul.addr %s112, 8
          %s114 = scalar_lea.vmem [#allocation4], %s113
          %s115 = sld [smem:[#allocation3 + %s25]]
          %s117 = ssub.s32 128, 128
          %118 = vsyncadd %s111, %s117
          %s119 = smul.addr %s26, 8
          %s120 = smul.addr %s115, 8
          %s121 = sadd.s32 %s119, %s120
          %s122 = smul.addr %s121, 16
          %s123 = scalar_lea.hbm %s1, %s122
          %s125 = sshll.u32 %s114, 4
          %s126 = int_to_ptr.vmem [resolvable:$true] %s125
          %128 = dma.hbm_to_vmem [thread:$0]  %s123, 128, %s126, %s111
        $region20: #{tpu_custom_call.1} parent=15 // pred_fallthru
          _
      $region16: #{tpu_custom_call.1} parent=5 // pred_fallthru
        _
      %p129 = scmp.le.s32.totalorder 1, %s18
      %p130 = scmp.lt.s32.totalorder %s18, 6
      %p131 = pnand %p129, %p130
      %p132 = pneg %p131
      // Predicated region
      $region21: #{tpu_custom_call.1} parent=5 // pred_check
        _
      $region22: #{tpu_custom_call.1} parent=5 // pred_check_branch
        %134 = sbr.rel (%p131) target = $region24
      $region23: #{tpu_custom_call.1} parent=5 // pred_region
        %s135 = ssub.s32 %s18, 1
        %s136 = sand.u32 %s47, 1
        %s137 = scalar_lea.sflag [#allocation5], %s136
        %s138 = sand.u32 %s47, 1
        %s139 = smul.addr %s138, 8
        %s140 = scalar_lea.vmem [#allocation4], %s139
        // Predicated region
        $region25: #{tpu_custom_call.1} parent=23 // pred_check
          %p141 = pneg %p60
        $region26: #{tpu_custom_call.1} parent=23 // pred_check_branch
          %143 = sbr.rel (%p141) target = $region28
        $region27: #{tpu_custom_call.1} parent=23 // pred_region
          %144 = dma.done %s137, 128
        $region28: #{tpu_custom_call.1} parent=23 // pred_fallthru
          _
        %s145 = sand.u32 %s47, 1
        %s146 = scalar_lea.sflag [#allocation5], %s145
        %s147 = sand.u32 %s47, 1
        %s148 = smul.addr %s147, 8
        %s149 = scalar_lea.vmem [#allocation4], %s148
        %p150 = pneg %p60
        %p151 = pneg %p57
        %p152 = pneg %p88
        %p153 = pneg %p85
        %s154 = sand.u32 %s75, 1
        %s155 = scalar_lea.sflag [#allocation6], %s154
        %s156 = sand.u32 %s75, 1
        %s157 = smul.addr %s156, 8
        %s158 = scalar_lea.vmem [#allocation7], %s157
        %s159 = sld [smem:[#allocation3 + %s27]]
        %v160 = vld [vmem:[%s140] sm:$0xff]
        %161 = vst [vmem:[%s158] sm:$0xff] %v160
        %s162 = sand.u32 %s75, 1
        %s163 = scalar_lea.sflag [#allocation6], %s162
        %s164 = sand.u32 %s75, 1
        %s165 = smul.addr %s164, 8
        %s166 = scalar_lea.vmem [#allocation7], %s165
        // Predicated region
        $region29: #{tpu_custom_call.1} parent=23 // pred_check
          %p167 = pneg %p85
        $region30: #{tpu_custom_call.1} parent=23 // pred_check_branch
          %169 = sbr.rel (%p167) target = $region32
        $region31: #{tpu_custom_call.1} parent=23 // pred_region
          %s171 = ssub.s32 128, 128
          %172 = vsyncadd %s163, %s171
          %s173 = smul.addr %s28, 8
          %s174 = smul.addr %s27, 8
          %s175 = sadd.s32 %s173, %s174
          %s176 = smul.addr %s175, 16
          %s177 = scalar_lea.hbm %s2, %s176
          %s179 = sshll.u32 %s166, 4
          %s180 = int_to_ptr.vmem [resolvable:$true] %s179
          %182 = dma.vmem_to_hbm [thread:$0]  %s180, 128, %s177, %s163
        $region32: #{tpu_custom_call.1} parent=23 // pred_fallthru
          _
      $region24: #{tpu_custom_call.1} parent=5 // pred_fallthru
        _
      %p183 = scmp.le.s32.totalorder 2, %s18
      // Predicated region
      $region33: #{tpu_custom_call.1} parent=5 // pred_check
        %p184 = pneg %p183
      $region34: #{tpu_custom_call.1} parent=5 // pred_check_branch
        %186 = sbr.rel (%p184) target = $region36
      $region35: #{tpu_custom_call.1} parent=5 // pred_region
        %s187 = ssub.s32 %s18, 2
        // Predicated region
        $region37: #{tpu_custom_call.1} parent=35 // pred_check
          %p188 = pneg %p91
        $region38: #{tpu_custom_call.1} parent=35 // pred_check_branch
          %190 = sbr.rel (%p188) target = $region40
        $region39: #{tpu_custom_call.1} parent=35 // pred_region
          %s191 = sand.u32 %s76, 1
          %s192 = scalar_lea.sflag [#allocation6], %s191
          %s193 = sand.u32 %s76, 1
          %s194 = smul.addr %s193, 8
          %s195 = scalar_lea.vmem [#allocation7], %s194
          %196 = dma.done %s192, 128
        $region40: #{tpu_custom_call.1} parent=35 // pred_fallthru
          _
      $region36: #{tpu_custom_call.1} parent=5 // pred_fallthru
        _
    $region6: #{tpu_custom_call.1} parent=1 // loop_footer
      %s22 = sadd.s32 1, %s18
    $region7: #{tpu_custom_call.1} parent=1 // loop_footer_branch
      %17 = sbr.rel target = $region3
    $region8: #{tpu_custom_call.1} parent=1 // loop_exit
      _
    %197 = vsyncpa [#allocation5], 1
    %s198 = scalar_lea.sflag [#allocation5], 1
    %199 = vsyncpa %s198, 1
    %200 = vsyncpa [#allocation6], 1
    %s201 = scalar_lea.sflag [#allocation6], 1
    %202 = vsyncpa %s201, 1

</llo_original>
